<compile_context>
chip_gen: v7x
topology: tpu7x:2x2x1
jax: 0.10.0
libtpu: 0.0.40
codegen_flags: <defaults>
</compile_context>

<pallas_src>
import jax
import jax.numpy as jnp
from jax.experimental import pallas as pl
from jax.experimental.pallas import tpu as pltpu

LANE = 128
SUB = 32          # row-block granularity: satisfies f32 (8,128), bf16 (16,128), u8 (32,128) tiling
_BIG = 2 ** 30    # "no valid class" sentinel; never equals a real label


def classes_loss(boundary_logits, gtmasks, *, block_rows=2048):
    """Returns (bce_loss, dice_loss) matching ClassesLoss.forward."""
    N, C, H, W = boundary_logits.shape
    assert C == 1, "boundary logits are expected to have a single channel"
    # TODO(synk): F.interpolate (bilinear, align_corners=True) resize path not
    # implemented; spatial shapes must already match (they do in this script).
    assert boundary_logits.shape[-2:] == gtmasks.shape[-2:]
    # NOTE: ClassesLoss.__init__'s laplacian_kernel / fuse_kernel parameters are
    # never used in forward(); nothing to initialize for the hot path.

    # ---- pre-pass: smallest class id not in {0, 255} (single fused reduction).
    # The int32 cast feeds straight into the reduce, so XLA reads gtmasks once at
    # its native width (1 B/elem for uint8 masks) without materializing a copy.
    gi = gtmasks.astype(jnp.int32)
    valid = (gi != 0) & (gi != 255)
    first_id = jnp.min(jnp.where(valid, gi, jnp.int32(_BIG)))
    fid_arr = first_id.reshape((1,))
    # The in-kernel target `g == first_id` omits the reference's explicit `& valid`:
    # equivalent because first_id can never be 0/255 (excluded by `valid`) and the
    # _BIG sentinel never matches a real label.

    # ---- layout: (metadata-only) reshape to a sublane/lane-dense (N, rows, 128) slab
    L = C * H * W
    x = boundary_logits
    if x.dtype not in (jnp.float32, jnp.bfloat16):
        x = x.astype(jnp.float32)          # bf16 streams through; upcast happens in-kernel
    g = gtmasks                            # labels stream at native width (uint8 => 1 B/elem)

    rows = -(-L // LANE)
    if L % LANE != 0:
        # TODO(synk): ragged tail fallback — pads the flat layout to a lane multiple
        # (full copy; not hit for the shapes in this script).
        pad = rows * LANE - L
        x = jnp.pad(x.reshape(N, L), ((0, 0), (0, pad)), constant_values=-1e4)
        g = jnp.pad(g.reshape(N, L), ((0, 0), (0, pad)), constant_values=0)
    x = x.reshape(N, rows, LANE)
    g = g.reshape(N, rows, LANE)

    if rows < SUB:
        # Tiny inputs only: pad the row axis to one full tile (negligible copy) so a
        # block never exceeds the array extent.  Pad logits with -1e4 (sigmoid -> 0,
        # every BCE/dice term -> exactly 0) and labels with 0 (never equals first_id).
        x = jnp.pad(x, ((0, 0), (0, SUB - rows), (0, 0)), constant_values=-1e4)
        g = jnp.pad(g, ((0, 0), (0, SUB - rows), (0, 0)), constant_values=0)
        rows = SUB
        R = SUB
    else:
        # No padding: the partial last chunk is masked inside the kernel.
        R = min(block_rows, (rows // SUB) * SUB)
    num_chunks = pl.cdiv(rows, R)
    need_mask = (rows % R) != 0

    def kernel(fid_ref, x_ref, g_ref, bce_ref, inter_ref, den_ref,
               acc_bce, acc_inter, acc_den):
        k = pl.program_id(1)

        @pl.when(k == 0)
        def _init():
            acc_bce[...] = jnp.zeros_like(acc_bce)
            acc_inter[...] = jnp.zeros_like(acc_inter)
            acc_den[...] = jnp.zeros_like(acc_den)

        x_blk = x_ref[0].astype(jnp.float32)          # (R, 128) logits (bf16 upcast here)
        g_blk = g_ref[0]                              # (R, 128) native-width labels
        t_b = g_blk.astype(jnp.int32) == fid_ref[0]   # fused target construction

        if need_mask:
            # Last chunk is a partial block: rows past `rows` hold undefined data.
            lim = rows - k * R                        # >= R for every non-last chunk
            row_id = jax.lax.broadcasted_iota(jnp.int32, (R, LANE), 0)
            m = row_id < lim
            x_blk = jnp.where(m, x_blk, -1e4)         # exp(-1e4) == 0 -> terms == 0
            t_b = t_b & m

        t = t_b.astype(jnp.float32)

        # One shared exp(-|x|); approx reciprocal (EUP) + one Newton step (VPU)
        # keeps sigmoid to ~1e-7 relative error while freeing the EUP slot.
        e = jnp.exp(-jnp.abs(x_blk))
        a = 1.0 + e
        r0 = pl.reciprocal(a, approx=True)
        r = r0 * (2.0 - a * r0)
        p = jnp.where(x_blk >= 0.0, r, e * r)         # sigmoid(x)

        # Stable BCE-with-logits: max(x,0) - x*t + log1p(exp(-|x|)).
        bce = jnp.maximum(x_blk, 0.0) - x_blk * t + jnp.log1p(e)

        # Tree-reduce (R,128) -> (8,128) with pure VPU adds *before* touching the
        # accumulators: tiny scratch loads/stores per step instead of (R,128) ones.
        acc_bce[...] += bce.reshape(R // 8, 8, LANE).sum(axis=0)
        acc_inter[...] += (p * t).reshape(R // 8, 8, LANE).sum(axis=0)
        acc_den[...] += (p + t).reshape(R // 8, 8, LANE).sum(axis=0)

        @pl.when(k == pl.num_programs(1) - 1)
        def _finalize():
            # One small cross-lane/sublane reduce per sample; lane-dense stores.
            bce_ref[...] = jnp.broadcast_to(jnp.sum(acc_bce[...]), bce_ref.shape)
            inter_ref[...] = jnp.broadcast_to(jnp.sum(acc_inter[...]), inter_ref.shape)
            den_ref[...] = jnp.broadcast_to(jnp.sum(acc_den[...]), den_ref.shape)

    total = N * rows * LANE
    out_sd = jax.ShapeDtypeStruct((N, 8, LANE), jnp.float32)

    # VMEM: 2 inputs x 2 buffers x R*128*itemsize (~2.5-4 MiB at R=2048) + 3 x (8,128)
    # f32 scratch — fits every generation's default scoped VMEM, no override needed.
    # TODO(synk): on v7x with N < 2 the chunk axis could additionally be core-split
    # for megacore; skipped here (the sample axis is already "parallel").
    bce_s, inter_s, den_s = pl.pallas_call(
        kernel,
        out_shape=(out_sd, out_sd, out_sd),
        grid_spec=pltpu.PrefetchScalarGridSpec(
            num_scalar_prefetch=1,
            grid=(N, num_chunks),
            in_specs=[
                pl.BlockSpec((1, R, LANE), lambda n, k, fid: (n, k, 0)),
                pl.BlockSpec((1, R, LANE), lambda n, k, fid: (n, k, 0)),
            ],
            out_specs=(
                pl.BlockSpec((1, 8, LANE), lambda n, k, fid: (n, 0, 0)),
                pl.BlockSpec((1, 8, LANE), lambda n, k, fid: (n, 0, 0)),
                pl.BlockSpec((1, 8, LANE), lambda n, k, fid: (n, 0, 0)),
            ),
            scratch_shapes=[pltpu.VMEM((8, LANE), jnp.float32)] * 3,
        ),
        compiler_params=pltpu.CompilerParams(
            dimension_semantics=("parallel", "arbitrary"),
        ),
        cost_estimate=pl.CostEstimate(
            flops=14 * total,
            transcendentals=3 * total,   # exp, log1p, approx reciprocal
            bytes_accessed=int(total * (x.dtype.itemsize + g.dtype.itemsize)
                               + 3 * N * 8 * LANE * 4),
        ),
    )(fid_arr, x, g)

    # ---- final scalar combines (tiny, plain JAX) ----
    bce_loss = jnp.sum(bce_s[:, 0, 0]) / (N * L)     # mean over the true elements
    smooth = 1.0
    dice = 1.0 - (2.0 * inter_s[:, 0, 0] + smooth) / (den_s[:, 0, 0] + smooth)
    dice_loss = jnp.mean(dice)
    return bce_loss, dice_loss


def _reference(boundary_logits, gtmasks):
    """Pure-JAX reference with identical semantics (for validation)."""
    g = gtmasks.astype(jnp.int32)
    valid = (g != 0) & (g != 255)
    first_id = jnp.min(jnp.where(valid, g, jnp.int32(_BIG)))
    target = ((g == first_id) & valid).astype(jnp.float32)[:, None, :, :]
    x = boundary_logits.astype(jnp.float32)
    bce = jnp.mean(jnp.maximum(x, 0.0) - x * target + jnp.log1p(jnp.exp(-jnp.abs(x))))
    p = jax.nn.sigmoid(x)
    n = x.shape[0]
    pf = p.reshape(n, -1)
    tf = target.reshape(n, -1)
    inter = jnp.sum(pf * tf, axis=1)
    dice = jnp.mean(1.0 - (2.0 * inter + 1.0) / (jnp.sum(pf, 1) + jnp.sum(tf, 1) + 1.0))
    return bce, dice


if __name__ == "__main__":
    key = jax.random.PRNGKey(0)
    loss_fn = jax.jit(classes_loss)

    def check(n, h, w, logits_dtype, mask_dtype, k):
        k1, k2 = jax.random.split(k)
        logits = jax.random.normal(k1, (n, 1, h, w), dtype=jnp.float32).astype(logits_dtype)
        gt = jax.random.randint(k2, (n, h, w), 0, 4, dtype=jnp.int32)
        gt = gt.at[:, :2, :2].set(255).astype(mask_dtype)   # {0,1,2,3} + ignore-255 patch
        bce, dice = loss_fn(logits, gt)
        jax.block_until_ready((bce, dice))
        bce_r, dice_r = _reference(logits, gt)
        assert jnp.allclose(bce, bce_r, rtol=1e-5, atol=1e-5), (bce, bce_r)
        assert jnp.allclose(dice, dice_r, rtol=1e-5, atol=1e-5), (dice, dice_r)

    k0, k1, k2 = jax.random.split(key, 3)
    check(2, 16, 16, jnp.float32, jnp.uint8, k0)     # tiny input: padded-rows path, uint8 labels
    check(2, 64, 80, jnp.float32, jnp.uint8, k1)     # partial last chunk: in-kernel mask path
    check(2, 64, 80, jnp.bfloat16, jnp.int32, k2)    # bf16 logits streamed, int32 labels
    print("KERNEL_OK")
</pallas_src>

<mosaic_0001>
module attributes {stable_mosaic.version = 11 : i64} {
  func.func @kernel(%arg0: i32, %arg1: i32, %arg2: memref<1xi32, #tpu.memory_space<smem>>, %arg3: memref<1x32x128xf32, #tpu.memory_space<vmem>>, %arg4: memref<1x32x128xi8, #tpu.memory_space<vmem>>, %arg5: memref<1x8x128xf32, #tpu.memory_space<vmem>>, %arg6: memref<1x8x128xf32, #tpu.memory_space<vmem>>, %arg7: memref<1x8x128xf32, #tpu.memory_space<vmem>>, %arg8: memref<8x128xf32, #tpu.memory_space<vmem>>, %arg9: memref<8x128xf32, #tpu.memory_space<vmem>>, %arg10: memref<8x128xf32, #tpu.memory_space<vmem>>) attributes {dimension_semantics = [#tpu.dimension_semantics<parallel>, #tpu.dimension_semantics<arbitrary>], iteration_bounds = array<i64: 2, 1>, scalar_prefetch = 1 : i64, scratch_operands = 3 : i64, tpu.core_type = #tpu.core_type<tc>, window_params = [{transform_indices = @transform_0, window_bounds = array<i64: 1, 32, 128>}, {transform_indices = @transform_1, window_bounds = array<i64: 1, 32, 128>}, {transform_indices = @transform_2, window_bounds = array<i64: 1, 8, 128>}, {transform_indices = @transform_3, window_bounds = array<i64: 1, 8, 128>}, {transform_indices = @transform_4, window_bounds = array<i64: 1, 8, 128>}]} {
    %c0_i32 = arith.constant 0 : i32
    %0 = arith.cmpi eq, %arg1, %c0_i32 : i32
    %1 = arith.extui %0 : i1 to i32
    %c0_i32_0 = arith.constant 0 : i32
    %2 = arith.cmpi ne, %1, %c0_i32_0 : i32
    scf.if %2 {
      %cst_28 = arith.constant 0.000000e+00 : f32
      %54 = vector.broadcast %cst_28 : f32 to vector<8x128xf32>
      %c0_29 = arith.constant 0 : index
      %c0_30 = arith.constant 0 : index
      %55 = vector.load %arg8[%c0_29, %c0_30] : memref<8x128xf32, #tpu.memory_space<vmem>>, vector<8x128xf32>
      tpu.vector_store %arg8[%c0_29, %c0_30], %54 {strides = array<i32>} : memref<8x128xf32, #tpu.memory_space<vmem>>, vector<8x128xf32>,
      %cst_31 = arith.constant 0.000000e+00 : f32
      %56 = vector.broadcast %cst_31 : f32 to vector<8x128xf32>
      %c0_32 = arith.constant 0 : index
      %c0_33 = arith.constant 0 : index
      %57 = vector.load %arg9[%c0_32, %c0_33] : memref<8x128xf32, #tpu.memory_space<vmem>>, vector<8x128xf32>
      tpu.vector_store %arg9[%c0_32, %c0_33], %56 {strides = array<i32>} : memref<8x128xf32, #tpu.memory_space<vmem>>, vector<8x128xf32>,
      %cst_34 = arith.constant 0.000000e+00 : f32
      %58 = vector.broadcast %cst_34 : f32 to vector<8x128xf32>
      %c0_35 = arith.constant 0 : index
      %c0_36 = arith.constant 0 : index
      %59 = vector.load %arg10[%c0_35, %c0_36] : memref<8x128xf32, #tpu.memory_space<vmem>>, vector<8x128xf32>
      tpu.vector_store %arg10[%c0_35, %c0_36], %58 {strides = array<i32>} : memref<8x128xf32, #tpu.memory_space<vmem>>, vector<8x128xf32>,
    } else {
    }
    %c0 = arith.constant 0 : index
    %c0_1 = arith.constant 0 : index
    %c0_2 = arith.constant 0 : index
    %3 = vector.load %arg3[%c0, %c0_1, %c0_2] : memref<1x32x128xf32, #tpu.memory_space<vmem>>, vector<1x32x128xf32>
    %4 = vector.shape_cast %3 : vector<1x32x128xf32> to vector<32x128xf32>
    %c0_3 = arith.constant 0 : index
    %c0_4 = arith.constant 0 : index
    %c0_5 = arith.constant 0 : index
    %5 = vector.load %arg4[%c0_3, %c0_4, %c0_5] : memref<1x32x128xi8, #tpu.memory_space<vmem>>, vector<1x32x128xi8>
    %6 = vector.shape_cast %5 : vector<1x32x128xi8> to vector<32x128xi8>
    %7 = arith.extui %6 : vector<32x128xi8> to vector<32x128xi32>
    %c0_6 = arith.constant 0 : index
    %8 = memref.load %arg2[%c0_6] : memref<1xi32, #tpu.memory_space<smem>>
    %9 = vector.broadcast %8 : i32 to vector<32x128xi32>
    %10 = arith.cmpi eq, %7, %9 : vector<32x128xi32>
    %11 = arith.extui %10 : vector<32x128xi1> to vector<32x128xi32>
    %12 = arith.sitofp %11 : vector<32x128xi32> to vector<32x128xf32>
    %13 = math.absf %4 : vector<32x128xf32>
    %cst = arith.constant 0.000000e+00 : f32
    %14 = vector.broadcast %cst : f32 to vector<32x128xf32>
    %15 = arith.subf %14, %13 : vector<32x128xf32>
    %16 = math.exp %15 : vector<32x128xf32>
    %cst_7 = arith.constant 1.000000e+00 : f32
    %17 = vector.broadcast %cst_7 : f32 to vector<32x128xf32>
    %18 = arith.addf %17, %16 : vector<32x128xf32>
    %19 = tpu.reciprocal %18 {approx = true} : vector<32x128xf32> -> vector<32x128xf32>
    %20 = arith.mulf %18, %19 : vector<32x128xf32>
    %cst_8 = arith.constant 2.000000e+00 : f32
    %21 = vector.broadcast %cst_8 : f32 to vector<32x128xf32>
    %22 = arith.subf %21, %20 : vector<32x128xf32>
    %23 = arith.mulf %19, %22 : vector<32x128xf32>
    %cst_9 = arith.constant 0.000000e+00 : f32
    %24 = vector.broadcast %cst_9 : f32 to vector<32x128xf32>
    %25 = arith.cmpf oge, %4, %24 : vector<32x128xf32>
    %26 = arith.mulf %16, %23 : vector<32x128xf32>
    %27 = arith.select %25, %23, %26 : vector<32x128xi1>, vector<32x128xf32>
    %cst_10 = arith.constant 0.000000e+00 : f32
    %28 = vector.broadcast %cst_10 : f32 to vector<32x128xf32>
    %29 = arith.maximumf %4, %28 : vector<32x128xf32>
    %30 = arith.mulf %4, %12 : vector<32x128xf32>
    %31 = arith.subf %29, %30 : vector<32x128xf32>
    %32 = math.log1p %16 : vector<32x128xf32>
    %33 = arith.addf %31, %32 : vector<32x128xf32>
    %c0_11 = arith.constant 0 : index
    %c0_12 = arith.constant 0 : index
    %34 = vector.load %arg8[%c0_11, %c0_12] : memref<8x128xf32, #tpu.memory_space<vmem>>, vector<8x128xf32>
    %35 = vector.shape_cast %33 : vector<32x128xf32> to vector<4x8x128xf32>
    %cst_13 = arith.constant dense<0.000000e+00> : vector<8x128xf32>
    %36 = vector.multi_reduction <add>, %35, %cst_13 [0] : vector<4x8x128xf32> to vector<8x128xf32>
    %37 = arith.addf %34, %36 : vector<8x128xf32>
    %c0_14 = arith.constant 0 : index
    %c0_15 = arith.constant 0 : index
    %38 = vector.load %arg8[%c0_14, %c0_15] : memref<8x128xf32, #tpu.memory_space<vmem>>, vector<8x128xf32>
    tpu.vector_store %arg8[%c0_14, %c0_15], %37 {strides = array<i32>} : memref<8x128xf32, #tpu.memory_space<vmem>>, vector<8x128xf32>,
    %c0_16 = arith.constant 0 : index
    %c0_17 = arith.constant 0 : index
    %39 = vector.load %arg9[%c0_16, %c0_17] : memref<8x128xf32, #tpu.memory_space<vmem>>, vector<8x128xf32>
    %40 = arith.mulf %27, %12 : vector<32x128xf32>
    %41 = vector.shape_cast %40 : vector<32x128xf32> to vector<4x8x128xf32>
    %cst_18 = arith.constant dense<0.000000e+00> : vector<8x128xf32>
    %42 = vector.multi_reduction <add>, %41, %cst_18 [0] : vector<4x8x128xf32> to vector<8x128xf32>
    %43 = arith.addf %39, %42 : vector<8x128xf32>
    %c0_19 = arith.constant 0 : index
    %c0_20 = arith.constant 0 : index
    %44 = vector.load %arg9[%c0_19, %c0_20] : memref<8x128xf32, #tpu.memory_space<vmem>>, vector<8x128xf32>
    tpu.vector_store %arg9[%c0_19, %c0_20], %43 {strides = array<i32>} : memref<8x128xf32, #tpu.memory_space<vmem>>, vector<8x128xf32>,
    %c0_21 = arith.constant 0 : index
    %c0_22 = arith.constant 0 : index
    %45 = vector.load %arg10[%c0_21, %c0_22] : memref<8x128xf32, #tpu.memory_space<vmem>>, vector<8x128xf32>
    %46 = arith.addf %27, %12 : vector<32x128xf32>
    %47 = vector.shape_cast %46 : vector<32x128xf32> to vector<4x8x128xf32>
    %cst_23 = arith.constant dense<0.000000e+00> : vector<8x128xf32>
    %48 = vector.multi_reduction <add>, %47, %cst_23 [0] : vector<4x8x128xf32> to vector<8x128xf32>
    %49 = arith.addf %45, %48 : vector<8x128xf32>
    %c0_24 = arith.constant 0 : index
    %c0_25 = arith.constant 0 : index
    %50 = vector.load %arg10[%c0_24, %c0_25] : memref<8x128xf32, #tpu.memory_space<vmem>>, vector<8x128xf32>
    tpu.vector_store %arg10[%c0_24, %c0_25], %49 {strides = array<i32>} : memref<8x128xf32, #tpu.memory_space<vmem>>, vector<8x128xf32>,
    %c0_i32_26 = arith.constant 0 : i32
    %51 = arith.cmpi eq, %arg1, %c0_i32_26 : i32
    %52 = arith.extui %51 : i1 to i32
    %c0_i32_27 = arith.constant 0 : i32
    %53 = arith.cmpi ne, %52, %c0_i32_27 : i32
    scf.if %53 {
      %c0_28 = arith.constant 0 : index
      %c0_29 = arith.constant 0 : index
      %54 = vector.load %arg8[%c0_28, %c0_29] : memref<8x128xf32, #tpu.memory_space<vmem>>, vector<8x128xf32>
      %55 = vector.shape_cast %54 : vector<8x128xf32> to vector<1x8x128xf32>
      %cst_30 = arith.constant dense<0.000000e+00> : vector<1xf32>
      %56 = vector.multi_reduction <add>, %55, %cst_30 [1, 2] : vector<1x8x128xf32> to vector<1xf32>
      %57 = vector.shape_cast %56 : vector<1xf32> to vector<1x1x1xf32>
      %58 = vector.extract %57[0, 0, 0] : f32 from vector<1x1x1xf32>
      %59 = vector.broadcast %58 : f32 to vector<1x8x128xf32>
      %c0_31 = arith.constant 0 : index
      %c0_32 = arith.constant 0 : index
      %c0_33 = arith.constant 0 : index
      %60 = vector.load %arg5[%c0_31, %c0_32, %c0_33] : memref<1x8x128xf32, #tpu.memory_space<vmem>>, vector<1x8x128xf32>
      tpu.vector_store %arg5[%c0_31, %c0_32, %c0_33], %59 {strides = array<i32>} : memref<1x8x128xf32, #tpu.memory_space<vmem>>, vector<1x8x128xf32>,
      %c0_34 = arith.constant 0 : index
      %c0_35 = arith.constant 0 : index
      %61 = vector.load %arg9[%c0_34, %c0_35] : memref<8x128xf32, #tpu.memory_space<vmem>>, vector<8x128xf32>
      %62 = vector.shape_cast %61 : vector<8x128xf32> to vector<1x8x128xf32>
      %cst_36 = arith.constant dense<0.000000e+00> : vector<1xf32>
      %63 = vector.multi_reduction <add>, %62, %cst_36 [1, 2] : vector<1x8x128xf32> to vector<1xf32>
      %64 = vector.shape_cast %63 : vector<1xf32> to vector<1x1x1xf32>
      %65 = vector.extract %64[0, 0, 0] : f32 from vector<1x1x1xf32>
      %66 = vector.broadcast %65 : f32 to vector<1x8x128xf32>
      %c0_37 = arith.constant 0 : index
      %c0_38 = arith.constant 0 : index
      %c0_39 = arith.constant 0 : index
      %67 = vector.load %arg6[%c0_37, %c0_38, %c0_39] : memref<1x8x128xf32, #tpu.memory_space<vmem>>, vector<1x8x128xf32>
      tpu.vector_store %arg6[%c0_37, %c0_38, %c0_39], %66 {strides = array<i32>} : memref<1x8x128xf32, #tpu.memory_space<vmem>>, vector<1x8x128xf32>,
      %c0_40 = arith.constant 0 : index
      %c0_41 = arith.constant 0 : index
      %68 = vector.load %arg10[%c0_40, %c0_41] : memref<8x128xf32, #tpu.memory_space<vmem>>, vector<8x128xf32>
      %69 = vector.shape_cast %68 : vector<8x128xf32> to vector<1x8x128xf32>
      %cst_42 = arith.constant dense<0.000000e+00> : vector<1xf32>
      %70 = vector.multi_reduction <add>, %69, %cst_42 [1, 2] : vector<1x8x128xf32> to vector<1xf32>
      %71 = vector.shape_cast %70 : vector<1xf32> to vector<1x1x1xf32>
      %72 = vector.extract %71[0, 0, 0] : f32 from vector<1x1x1xf32>
      %73 = vector.broadcast %72 : f32 to vector<1x8x128xf32>
      %c0_43 = arith.constant 0 : index
      %c0_44 = arith.constant 0 : index
      %c0_45 = arith.constant 0 : index
      %74 = vector.load %arg7[%c0_43, %c0_44, %c0_45] : memref<1x8x128xf32, #tpu.memory_space<vmem>>, vector<1x8x128xf32>
      tpu.vector_store %arg7[%c0_43, %c0_44, %c0_45], %73 {strides = array<i32>} : memref<1x8x128xf32, #tpu.memory_space<vmem>>, vector<1x8x128xf32>,
    } else {
    }
    return
  }
  func.func @transform_0(%arg0: i32, %arg1: i32, %arg2: memref<1xi32, #tpu.memory_space<smem>>) -> (i32, i32, i32) {
    %c0_i32 = arith.constant 0 : i32
    %c0_i32_0 = arith.constant 0 : i32
    return %arg0, %arg1, %c0_i32 : i32, i32, i32
  }
  func.func @transform_1(%arg0: i32, %arg1: i32, %arg2: memref<1xi32, #tpu.memory_space<smem>>) -> (i32, i32, i32) {
    %c0_i32 = arith.constant 0 : i32
    %c0_i32_0 = arith.constant 0 : i32
    return %arg0, %arg1, %c0_i32 : i32, i32, i32
  }
  func.func @transform_2(%arg0: i32, %arg1: i32, %arg2: memref<1xi32, #tpu.memory_space<smem>>) -> (i32, i32, i32) {
    %c0_i32 = arith.constant 0 : i32
    %c0_i32_0 = arith.constant 0 : i32
    %c0_i32_1 = arith.constant 0 : i32
    return %arg0, %c0_i32, %c0_i32_0 : i32, i32, i32
  }
  func.func @transform_3(%arg0: i32, %arg1: i32, %arg2: memref<1xi32, #tpu.memory_space<smem>>) -> (i32, i32, i32) {
    %c0_i32 = arith.constant 0 : i32
    %c0_i32_0 = arith.constant 0 : i32
    %c0_i32_1 = arith.constant 0 : i32
    return %arg0, %c0_i32, %c0_i32_0 : i32, i32, i32
  }
  func.func @transform_4(%arg0: i32, %arg1: i32, %arg2: memref<1xi32, #tpu.memory_space<smem>>) -> (i32, i32, i32) {
    %c0_i32 = arith.constant 0 : i32
    %c0_i32_0 = arith.constant 0 : i32
    %c0_i32_1 = arith.constant 0 : i32
    return %arg0, %c0_i32, %c0_i32_0 : i32, i32, i32
  }
}

</mosaic_0001>

<llo_original>
// kernel: classes_loss.1
$region0: #{classes_loss.1}
  #allocation0 [shape = 'u32[]', space=smem, size = 0x4, offset = 0x4, fixed_abs, tag = 'smem constant byte address 0x4 - core index']
  #allocation1 [shape = 'u32[144,128]{1,0:T(1,128)}', space=vmem, size = 0x12000, scoped, tag = 'internal scratch']
  #allocation2 [shape = 'f32[8,128]{1,0:T(8,128)}', space=vmem, size = 0x1000, scoped, tag = 'scratch operand']
  #allocation3 [shape = 'f32[8,128]{1,0:T(8,128)}', space=vmem, size = 0x1000, scoped, tag = 'scratch operand']
  #allocation4 [shape = 'f32[8,128]{1,0:T(8,128)}', space=vmem, size = 0x1000, scoped, tag = 'scratch operand']
  #allocation5 [shape = 's32[1]{0}', space=sflag, size = 0x4, scoped, tag = 'scoped memory for classes_loss.1']
  #allocation6 [shape = 's32[1]{0:T(128)S(6)}', space=smem, size = 0x200, scoped, tag = 'prefetched SMEM operand 0']
  %s0 = inlined_call_operand.<no memory space> [shape: s32[1], index: 0, kind: input, shape index: {}]
  %s1 = inlined_call_operand.vmem [shape: f32[2,32,128], index: 1, kind: input, shape index: {}]
  %s2 = inlined_call_operand.vmem [shape: u8[2,32,128], index: 2, kind: input, shape index: {}]
  %s3 = inlined_call_operand.vmem [shape: f32[2,8,128], index: 3, kind: output, shape index: {0}]
  %s4 = inlined_call_operand.vmem [shape: f32[2,8,128], index: 4, kind: output, shape index: {1}]
  %s5 = inlined_call_operand.vmem [shape: f32[2,8,128], index: 5, kind: output, shape index: {2}]
  %6 = xla_tuple %s3, %s4, %s5
  %s7 = sld [smem:[#allocation0]]
  $region65: #{classes_loss.1} parent=0
    _
  %s9 = ssub.s32 1, %s7
  %s10 = scalar_select 0, %s9, %s7
  %11 = sst [smem:[#allocation6]] %s0
  loop: start=0, step=1, limit=4
  $region2: #{classes_loss.1} parent=0 // loop_pre_header
    _
  $region3: #{classes_loss.1} parent=0 // loop_header
    %s13 = sphi 0, %s17
    %p14 = scmp.ge.s32.totalorder %s13, 4
    %s20 = sphi 0, %s32
    %s21 = sphi 0, %s28
    %s22 = sphi 0, %s20
    %s23 = sphi 0, %s21
    %s24 = sphi 0, %s22
    %s25 = sphi 0, %s23
    %s37 = sphi 0, %s39
    %s40 = sphi 0, %s37
    %s41 = sphi 0, %s40
    %s57 = sphi 0, %s41
    %s65 = sphi 0, %s67
    %s68 = sphi 0, %s65
    %s69 = sphi 0, %s68
    %s85 = sphi 0, %s69
    %s91 = sphi 0, %s93
    %s94 = sphi 0, %s91
    %s95 = sphi 0, %s94
    %s111 = sphi 0, %s95
    %s117 = sphi 0, %s119
    %s120 = sphi 0, %s117
    %s121 = sphi 0, %s120
    %s137 = sphi 0, %s121
    %s143 = sphi 0, %s145
    %s146 = sphi 0, %s143
    %s147 = sphi 0, %s146
    %s163 = sphi 0, %s147
  $region4: #{classes_loss.1} parent=0 // loop_header_branch
    %16 = sbr.rel (%p14) target = $region8
  $region5: #{classes_loss.1} parent=0 // loop_body
    %s18 = ssub.s32 %s13, 1
    %s19 = ssub.s32 %s13, 2
    %s26 = sadd.s32 1, %s21
    %p27 = scmp.ge.s32.totalorder %s26, 1
    %s28 = scalar_select %p27, 0, %s26
    %s29 = sadd.s32 1, %s20
    %s30 = scalar_select %p27, %s29, %s20
    %p31 = scmp.ge.s32.totalorder %s30, 2
    %s32 = scalar_select %p31, 0, %s30
    %s33 = ssub.s32 %s20, %s32
    %s34 = ssub.s32 %s21, %s28
    %s35 = sor.u32 %s33, %s34
    %p36 = scmp.eq.s32.totalorder %s35, 0
    %s38 = sadd.s32 %s37, 1
    %s39 = scalar_select %p36, %s37, %s38
    %p42 = pneg %p36
    %p43 = scmp.eq.s32.totalorder %s13, 1
    %p44 = por %p42, %p43
    %p45 = scmp.ne.s32.totalorder %s37, %s40
    %p46 = scmp.eq.s32.totalorder %s13, 0
    %p47 = por %p45, %p46
    %p48 = scmp.ne.s32.totalorder %s37, %s40
    %p49 = scmp.eq.s32.totalorder %s18, 1
    %p50 = por %p48, %p49
    %p51 = scmp.ne.s32.totalorder %s40, %s41
    %p52 = scmp.eq.s32.totalorder %s18, 0
    %p53 = por %p51, %p52
    %p54 = scmp.ne.s32.totalorder %s40, %s41
    %p55 = scmp.eq.s32.totalorder %s19, 1
    %p56 = por %p54, %p55
    %p58 = scmp.ne.s32.totalorder %s41, %s57
    %p59 = scmp.eq.s32.totalorder %s19, 0
    %p60 = por %p58, %p59
    %s61 = ssub.s32 %s20, %s32
    %s62 = ssub.s32 %s21, %s28
    %s63 = sor.u32 %s61, %s62
    %p64 = scmp.eq.s32.totalorder %s63, 0
    %s66 = sadd.s32 %s65, 1
    %s67 = scalar_select %p64, %s65, %s66
    %p70 = pneg %p64
    %p71 = scmp.eq.s32.totalorder %s13, 1
    %p72 = por %p70, %p71
    %p73 = scmp.ne.s32.totalorder %s65, %s68
    %p74 = scmp.eq.s32.totalorder %s13, 0
    %p75 = por %p73, %p74
    %p76 = scmp.ne.s32.totalorder %s65, %s68
    %p77 = scmp.eq.s32.totalorder %s18, 1
    %p78 = por %p76, %p77
    %p79 = scmp.ne.s32.totalorder %s68, %s69
    %p80 = scmp.eq.s32.totalorder %s18, 0
    %p81 = por %p79, %p80
    %p82 = scmp.ne.s32.totalorder %s68, %s69
    %p83 = scmp.eq.s32.totalorder %s19, 1
    %p84 = por %p82, %p83
    %p86 = scmp.ne.s32.totalorder %s69, %s85
    %p87 = scmp.eq.s32.totalorder %s19, 0
    %p88 = por %p86, %p87
    %s89 = ssub.s32 %s20, %s32
    %p90 = scmp.eq.s32.totalorder %s89, 0
    %s92 = sadd.s32 %s91, 1
    %s93 = scalar_select %p90, %s91, %s92
    %p96 = pneg %p90
    %p97 = scmp.eq.s32.totalorder %s13, 1
    %p98 = por %p96, %p97
    %p99 = scmp.ne.s32.totalorder %s91, %s94
    %p100 = scmp.eq.s32.totalorder %s13, 0
    %p101 = por %p99, %p100
    %p102 = scmp.ne.s32.totalorder %s91, %s94
    %p103 = scmp.eq.s32.totalorder %s18, 1
    %p104 = por %p102, %p103
    %p105 = scmp.ne.s32.totalorder %s94, %s95
    %p106 = scmp.eq.s32.totalorder %s18, 0
    %p107 = por %p105, %p106
    %p108 = scmp.ne.s32.totalorder %s94, %s95
    %p109 = scmp.eq.s32.totalorder %s19, 1
    %p110 = por %p108, %p109
    %p112 = scmp.ne.s32.totalorder %s95, %s111
    %p113 = scmp.eq.s32.totalorder %s19, 0
    %p114 = por %p112, %p113
    %s115 = ssub.s32 %s20, %s32
    %p116 = scmp.eq.s32.totalorder %s115, 0
    %s118 = sadd.s32 %s117, 1
    %s119 = scalar_select %p116, %s117, %s118
    %p122 = pneg %p116
    %p123 = scmp.eq.s32.totalorder %s13, 1
    %p124 = por %p122, %p123
    %p125 = scmp.ne.s32.totalorder %s117, %s120
    %p126 = scmp.eq.s32.totalorder %s13, 0
    %p127 = por %p125, %p126
    %p128 = scmp.ne.s32.totalorder %s117, %s120
    %p129 = scmp.eq.s32.totalorder %s18, 1
    %p130 = por %p128, %p129
    %p131 = scmp.ne.s32.totalorder %s120, %s121
    %p132 = scmp.eq.s32.totalorder %s18, 0
    %p133 = por %p131, %p132
    %p134 = scmp.ne.s32.totalorder %s120, %s121
    %p135 = scmp.eq.s32.totalorder %s19, 1
    %p136 = por %p134, %p135
    %p138 = scmp.ne.s32.totalorder %s121, %s137
    %p139 = scmp.eq.s32.totalorder %s19, 0
    %p140 = por %p138, %p139
    %s141 = ssub.s32 %s20, %s32
    %p142 = scmp.eq.s32.totalorder %s141, 0
    %s144 = sadd.s32 %s143, 1
    %s145 = scalar_select %p142, %s143, %s144
    %p148 = pneg %p142
    %p149 = scmp.eq.s32.totalorder %s13, 1
    %p150 = por %p148, %p149
    %p151 = scmp.ne.s32.totalorder %s143, %s146
    %p152 = scmp.eq.s32.totalorder %s13, 0
    %p153 = por %p151, %p152
    %p154 = scmp.ne.s32.totalorder %s143, %s146
    %p155 = scmp.eq.s32.totalorder %s18, 1
    %p156 = por %p154, %p155
    %p157 = scmp.ne.s32.totalorder %s146, %s147
    %p158 = scmp.eq.s32.totalorder %s18, 0
    %p159 = por %p157, %p158
    %p160 = scmp.ne.s32.totalorder %s146, %s147
    %p161 = scmp.eq.s32.totalorder %s19, 1
    %p162 = por %p160, %p161
    %p164 = scmp.ne.s32.totalorder %s147, %s163
    %p165 = scmp.eq.s32.totalorder %s19, 0
    %p166 = por %p164, %p165
    %p167 = scmp.le.s32.totalorder 1, %s13
    %p168 = scmp.lt.s32.totalorder %s13, 3
    %p169 = pnand %p167, %p168
    %p170 = pneg %p169
    // Predicated region
    $region9: #{classes_loss.1} parent=5 // pred_check
      _
    $region10: #{classes_loss.1} parent=5 // pred_check_branch
      %172 = sbr.rel (%p169) target = $region12
    $region11: #{classes_loss.1} parent=5 // pred_region
      %s173 = ssub.s32 %s13, 1
    $region12: #{classes_loss.1} parent=5 // pred_fallthru
      _
    %p174 = scmp.lt.s32.totalorder %s13, 2
    // Predicated region
    $region13: #{classes_loss.1} parent=5 // pred_check
      %p175 = pneg %p174
    $region14: #{classes_loss.1} parent=5 // pred_check_branch
      %177 = sbr.rel (%p175) target = $region16
    $region15: #{classes_loss.1} parent=5 // pred_region
      // Predicated region
      $region17: #{classes_loss.1} parent=15 // pred_check
        %p178 = pneg %p47
      $region18: #{classes_loss.1} parent=15 // pred_check_branch
        %180 = sbr.rel (%p178) target = $region20
      $region19: #{classes_loss.1} parent=15 // pred_region
        %s181 = smul.u32 4, %s21
        %p182 = scmp.lt.s32.totalorder %s20, 1
        %s183 = scalar_select %p182, %s20, 1
        %p184 = scmp.lt.s32.totalorder %s181, 3
        %s185 = scalar_select %p184, %s181, 3
        %s186 = smul.addr %s183, 4
        %s187 = sadd.s32 %s185, %s186
        %s188 = smul.addr %s187, 8
        %s189 = scalar_lea.vmem %s1, %s188
        %s190 = smul.u32 4, %s21
      $region20: #{classes_loss.1} parent=15 // pred_fallthru
        _
      // Predicated region
      $region21: #{classes_loss.1} parent=15 // pred_check
        %p191 = pneg %p75
      $region22: #{classes_loss.1} parent=15 // pred_check_branch
        %193 = sbr.rel (%p191) target = $region24
      $region23: #{classes_loss.1} parent=15 // pred_region
        %p194 = scmp.lt.s32.totalorder %s20, 1
        %s195 = scalar_select %p194, %s20, 1
        %p196 = scmp.lt.s32.totalorder %s21, 0
        %s197 = scalar_select %p196, %s21, 0
        %s198 = sadd.s32 %s197, %s195
        %s199 = smul.addr %s198, 8
        %s200 = scalar_lea.vmem %s2, %s199
      $region24: #{classes_loss.1} parent=15 // pred_fallthru
        _
    $region16: #{classes_loss.1} parent=5 // pred_fallthru
      _
    %p201 = scmp.le.s32.totalorder 1, %s13
    %p202 = scmp.lt.s32.totalorder %s13, 3
    %p203 = pnand %p201, %p202
    %p204 = pneg %p203
    // Predicated region
    $region25: #{classes_loss.1} parent=5 // pred_check
      _
    $region26: #{classes_loss.1} parent=5 // pred_check_branch
      %206 = sbr.rel (%p203) target = $region28
    $region27: #{classes_loss.1} parent=5 // pred_region
      %s207 = ssub.s32 %s13, 1
      %s208 = smul.u32 4, %s23
      %p209 = scmp.lt.s32.totalorder %s22, 1
      %s210 = scalar_select %p209, %s22, 1
      %p211 = scmp.lt.s32.totalorder %s208, 3
      %s212 = scalar_select %p211, %s208, 3
      %s213 = smul.addr %s210, 4
      %s214 = sadd.s32 %s212, %s213
      %s215 = smul.addr %s214, 8
      %s216 = scalar_lea.vmem %s1, %s215
      %p217 = pneg %p53
      %p218 = pneg %p50
      %p219 = scmp.lt.s32.totalorder %s22, 1
      %s220 = scalar_select %p219, %s22, 1
      %p221 = scmp.lt.s32.totalorder %s23, 0
      %s222 = scalar_select %p221, %s23, 0
      %s223 = sadd.s32 %s222, %s220
      %s224 = smul.addr %s223, 8
      %s225 = scalar_lea.vmem %s2, %s224
      %p226 = pneg %p81
      %p227 = pneg %p78
      %p228 = pneg %p107
      %p229 = pneg %p104
      %p230 = scmp.lt.s32.totalorder %s22, 1
      %s231 = scalar_select %p230, %s22, 1
      %s232 = smul.addr %s231, 8
      %s233 = scalar_lea.vmem %s3, %s232
      %p234 = pneg %p133
      %p235 = pneg %p130
      %p236 = scmp.lt.s32.totalorder %s22, 1
      %s237 = scalar_select %p236, %s22, 1
      %s238 = smul.addr %s237, 8
      %s239 = scalar_lea.vmem %s4, %s238
      %p240 = pneg %p159
      %p241 = pneg %p156
      %p242 = scmp.lt.s32.totalorder %s22, 1
      %s243 = scalar_select %p242, %s22, 1
      %s244 = smul.addr %s243, 8
      %s245 = scalar_lea.vmem %s5, %s244
      %s246 = smul.u32 4, %s23
      %p247 = scmp.lt.s32.totalorder %s22, 1
      %s248 = scalar_select %p247, %s22, 1
      %p249 = scmp.lt.s32.totalorder %s246, 3
      %s250 = scalar_select %p249, %s246, 3
      %s251 = smul.addr %s248, 4
      %s252 = sadd.s32 %s250, %s251
      %s253 = smul.addr %s252, 8
      %s254 = scalar_lea.vmem %s1, %s253
      %s255 = smul.u32 4, %s23
      %p256 = scmp.lt.s32.totalorder %s22, 1
      %s257 = scalar_select %p256, %s22, 1
      %p258 = scmp.lt.s32.totalorder %s23, 0
      %s259 = scalar_select %p258, %s23, 0
      %s260 = sadd.s32 %s259, %s257
      %s261 = smul.addr %s260, 8
      %s262 = scalar_lea.vmem %s2, %s261
      %p263 = scmp.lt.s32.totalorder %s22, 1
      %s264 = scalar_select %p263, %s22, 1
      %s265 = smul.addr %s264, 8
      %s266 = scalar_lea.vmem %s3, %s265
      %p267 = scmp.lt.s32.totalorder %s22, 1
      %s268 = scalar_select %p267, %s22, 1
      %s269 = smul.addr %s268, 8
      %s270 = scalar_lea.vmem %s4, %s269
      %p271 = scmp.lt.s32.totalorder %s22, 1
      %s272 = scalar_select %p271, %s22, 1
      %s273 = smul.addr %s272, 8
      %s274 = scalar_lea.vmem %s5, %s273
      %p275 = scmp.eq.s32.totalorder %s23, 0
      // Predicated region
      $region29: #{classes_loss.1} parent=27 // pred_check
        %p276 = pneg %p275
      $region30: #{classes_loss.1} parent=27 // pred_check_branch
        %278 = sbr.rel (%p276) target = $region32
      $region31: #{classes_loss.1} parent=27 // pred_region
        %279 = vst [vmem:[#allocation2] sm:$0xff] 0.0
        %280 = vst [vmem:[#allocation3] sm:$0xff] 0.0
        %281 = vst [vmem:[#allocation4] sm:$0xff] 0.0
      $region32: #{classes_loss.1} parent=27 // pred_fallthru
        _
      %v282 = vld [vmem:[%s254] sm:$0xff]
      %v283 = vld [vmem:[%s254 + $0x8] sm:$0xff]
      %v284 = vld [vmem:[%s254 + $0x10] sm:$0xff]
      %v285 = vld [vmem:[%s254 + $0x18] sm:$0xff]
      %v286 = vld [vmem:[%s262] sm:$0xff]
      %v287 = vunpack.c.0.s8 %v286
      %v288 = vunpack.c.1.s8 %v286
      %v289 = vunpack.c.2.s8 %v286
      %v290 = vunpack.c.3.s8 %v286
      %v291 = vand.u32 %v287, 255
      %v292 = vand.u32 %v288, 255
      %v293 = vand.u32 %v289, 255
      %v294 = vand.u32 %v290, 255
      %s295 = sld [smem:[#allocation6]]
      %v296 = vstv %s295
      %vm297 = vcmp.eq.s32.totalorder %v291, %v296
      %vm298 = vcmp.eq.s32.totalorder %v292, %v296
      %vm299 = vcmp.eq.s32.totalorder %v293, %v296
      %vm300 = vcmp.eq.s32.totalorder %v294, %v296
      %v301 = vsel %vm297, 1, 0
      %v302 = vsel %vm298, 1, 0
      %v303 = vsel %vm299, 1, 0
      %v304 = vsel %vm300, 1, 0
      %v305 = vcvt.s32.f32 %v301
      %v306 = vcvt.s32.f32 %v302
      %v307 = vcvt.s32.f32 %v303
      %v308 = vcvt.s32.f32 %v304
      %v309 = vand.u32 2147483647, %v282
      %v310 = vand.u32 2147483647, %v283
      %v311 = vand.u32 2147483647, %v284
      %v312 = vand.u32 2147483647, %v285
      %v313 = vsub.f32 0.0, %v309
      %v314 = vsub.f32 0.0, %v310
      %v315 = vsub.f32 0.0, %v311
      %v316 = vsub.f32 0.0, %v312
      %v317 = vmul.f32 %v313, 1.442695
      %v318 = vpow.pop %v317
      %v319 = vmul.f32 %v314, 1.442695
      %v320 = vpow.pop %v319
      %v321 = vmul.f32 %v315, 1.442695
      %v322 = vpow.pop %v321
      %v323 = vmul.f32 %v316, 1.442695
      %v324 = vpow.pop %v323
      %v325 = vadd.f32 %v318, 1.0
      %v326 = vadd.f32 %v320, 1.0
      %v327 = vadd.f32 %v322, 1.0
      %v328 = vadd.f32 %v324, 1.0
      %v329 = vrcp.pop %v325
      %v330 = vrcp.pop %v326
      %v331 = vrcp.pop %v327
      %v332 = vrcp.pop %v328
      %v333 = vmul.f32 %v325, %v329
      %v334 = vmul.f32 %v326, %v330
      %v335 = vmul.f32 %v327, %v331
      %v336 = vmul.f32 %v328, %v332
      %v337 = vsub.f32 2.0, %v333
      %v338 = vsub.f32 2.0, %v334
      %v339 = vsub.f32 2.0, %v335
      %v340 = vsub.f32 2.0, %v336
      %v341 = vmul.f32 %v329, %v337
      %v342 = vmul.f32 %v330, %v338
      %v343 = vmul.f32 %v331, %v339
      %v344 = vmul.f32 %v332, %v340
      %vm345 = vcmp.ge.f32.partialorder %v282, 0.0
      %vm346 = vcmp.ge.f32.partialorder %v283, 0.0
      %vm347 = vcmp.ge.f32.partialorder %v284, 0.0
      %vm348 = vcmp.ge.f32.partialorder %v285, 0.0
      %v349 = vmul.f32 %v318, %v341
      %v350 = vmul.f32 %v320, %v342
      %v351 = vmul.f32 %v322, %v343
      %v352 = vmul.f32 %v324, %v344
      %v353 = vsel %vm345, %v341, %v349
      %v354 = vsel %vm346, %v342, %v350
      %v355 = vsel %vm347, %v343, %v351
      %v356 = vsel %vm348, %v344, %v352
      %v357 = vmax.f32 %v282, 0.0
      %v358 = vmax.f32 %v283, 0.0
      %v359 = vmax.f32 %v284, 0.0
      %v360 = vmax.f32 %v285, 0.0
      %v361 = vmul.f32 %v282, %v305
      %v362 = vmul.f32 %v283, %v306
      %v363 = vmul.f32 %v284, %v307
      %v364 = vmul.f32 %v285, %v308
      %v365 = vsub.f32 %v357, %v361
      %v366 = vsub.f32 %v358, %v362
      %v367 = vsub.f32 %v359, %v363
      %v368 = vsub.f32 %v360, %v364
      %v369 = vadd.f32 %v318, 1.0
      %v370 = vlog2.pop %v369
      %v371 = vmul.f32 %v370, 0.6931472
      %v372 = vmul.f32 -0.5, %v318
      %v373 = vadd.f32 %v372, 1.0
      %v374 = vmul.f32 %v373, %v318
      %v375 = vand.u32 2147483647, %v318
      %vm376 = vcmp.lt.f32.partialorder %v375, 0.0004427343
      %v377 = vsel %vm376, %v374, %v371
      %v378 = vadd.f32 %v320, 1.0
      %v379 = vlog2.pop %v378
      %v380 = vmul.f32 %v379, 0.6931472
      %v381 = vmul.f32 -0.5, %v320
      %v382 = vadd.f32 %v381, 1.0
      %v383 = vmul.f32 %v382, %v320
      %v384 = vand.u32 2147483647, %v320
      %vm385 = vcmp.lt.f32.partialorder %v384, 0.0004427343
      %v386 = vsel %vm385, %v383, %v380
      %v387 = vadd.f32 %v322, 1.0
      %v388 = vlog2.pop %v387
      %v389 = vmul.f32 %v388, 0.6931472
      %v390 = vmul.f32 -0.5, %v322
      %v391 = vadd.f32 %v390, 1.0
      %v392 = vmul.f32 %v391, %v322
      %v393 = vand.u32 2147483647, %v322
      %vm394 = vcmp.lt.f32.partialorder %v393, 0.0004427343
      %v395 = vsel %vm394, %v392, %v389
      %v396 = vadd.f32 %v324, 1.0
      %v397 = vlog2.pop %v396
      %v398 = vmul.f32 %v397, 0.6931472
      %v399 = vmul.f32 -0.5, %v324
      %v400 = vadd.f32 %v399, 1.0
      %v401 = vmul.f32 %v400, %v324
      %v402 = vand.u32 2147483647, %v324
      %vm403 = vcmp.lt.f32.partialorder %v402, 0.0004427343
      %v404 = vsel %vm403, %v401, %v398
      %v405 = vadd.f32 %v365, %v377
      %v406 = vadd.f32 %v366, %v386
      %v407 = vadd.f32 %v367, %v395
      %v408 = vadd.f32 %v368, %v404
      %v409 = vld [vmem:[#allocation2] sm:$0xff]
      %v410 = vadd.f32 %v405, %v406
      %v411 = vadd.f32 %v410, %v407
      %v412 = vadd.f32 %v411, %v408
      %v413 = vadd.f32 %v409, %v412
      %414 = vst [vmem:[#allocation2] sm:$0xff] %v413
      %v415 = vld [vmem:[#allocation3] sm:$0xff]
      %v416 = vmul.f32 %v353, %v305
      %v417 = vmul.f32 %v354, %v306
      %v418 = vmul.f32 %v355, %v307
      %v419 = vmul.f32 %v356, %v308
      %v420 = vadd.f32 %v416, %v417
      %v421 = vadd.f32 %v420, %v418
      %v422 = vadd.f32 %v421, %v419
      %v423 = vadd.f32 %v415, %v422
      %424 = vst [vmem:[#allocation3] sm:$0xff] %v423
      %v425 = vld [vmem:[#allocation4] sm:$0xff]
      %v426 = vadd.f32 %v353, %v305
      %v427 = vadd.f32 %v354, %v306
      %v428 = vadd.f32 %v355, %v307
      %v429 = vadd.f32 %v356, %v308
      %v430 = vadd.f32 %v426, %v427
      %v431 = vadd.f32 %v430, %v428
      %v432 = vadd.f32 %v431, %v429
      %v433 = vadd.f32 %v425, %v432
      %434 = vst [vmem:[#allocation4] sm:$0xff] %v433
      // Predicated region
      $region33: #{classes_loss.1} parent=27 // pred_check
        %p435 = pneg %p275
      $region34: #{classes_loss.1} parent=27 // pred_check_branch
        %437 = sbr.rel (%p435) target = $region36
      $region35: #{classes_loss.1} parent=27 // pred_region
        %v438 = vld [vmem:[#allocation2] sm:$0xff]
        %439 = vadd.xlane.f32.xlu0 %v438
        %v440 = vpop.xlane.xlu0 %439
        %v441 = vrot.slane %v440, 4
        %v442 = vadd.f32 %v440, %v441
        %v443 = vrot.slane %v442, 2
        %v444 = vadd.f32 %v442, %v443
        %v445 = vrot.slane %v444, 1
        %v446 = vadd.f32 %v444, %v445
        %s447 = vtos %v446
        %v448 = vstv %s447
        %449 = vst [vmem:[%s266] sm:$0xff] %v448
        %v450 = vld [vmem:[#allocation3] sm:$0xff]
        %451 = vadd.xlane.f32.xlu0 %v450
        %v452 = vpop.xlane.xlu0 %451
        %v453 = vrot.slane %v452, 4
        %v454 = vadd.f32 %v452, %v453
        %v455 = vrot.slane %v454, 2
        %v456 = vadd.f32 %v454, %v455
        %v457 = vrot.slane %v456, 1
        %v458 = vadd.f32 %v456, %v457
        %s459 = vtos %v458
        %v460 = vstv %s459
        %461 = vst [vmem:[%s270] sm:$0xff] %v460
        %v462 = vld [vmem:[#allocation4] sm:$0xff]
        %463 = vadd.xlane.f32.xlu0 %v462
        %v464 = vpop.xlane.xlu0 %463
        %v465 = vrot.slane %v464, 4
        %v466 = vadd.f32 %v464, %v465
        %v467 = vrot.slane %v466, 2
        %v468 = vadd.f32 %v466, %v467
        %v469 = vrot.slane %v468, 1
        %v470 = vadd.f32 %v468, %v469
        %s471 = vtos %v470
        %v472 = vstv %s471
        %473 = vst [vmem:[%s274] sm:$0xff] %v472
      $region36: #{classes_loss.1} parent=27 // pred_fallthru
        _
      %p474 = scmp.lt.s32.totalorder %s22, 1
      %s475 = scalar_select %p474, %s22, 1
      %s476 = smul.addr %s475, 8
      %s477 = scalar_lea.vmem %s3, %s476
      %p478 = scmp.lt.s32.totalorder %s22, 1
      %s479 = scalar_select %p478, %s22, 1
      %s480 = smul.addr %s479, 8
      %s481 = scalar_lea.vmem %s4, %s480
      %p482 = scmp.lt.s32.totalorder %s22, 1
      %s483 = scalar_select %p482, %s22, 1
      %s484 = smul.addr %s483, 8
      %s485 = scalar_lea.vmem %s5, %s484
      // Predicated region
      $region37: #{classes_loss.1} parent=27 // pred_check
        %p486 = pneg %p104
      $region38: #{classes_loss.1} parent=27 // pred_check_branch
        %488 = sbr.rel (%p486) target = $region40
      $region39: #{classes_loss.1} parent=27 // pred_region
        _
      $region40: #{classes_loss.1} parent=27 // pred_fallthru
        _
      // Predicated region
      $region41: #{classes_loss.1} parent=27 // pred_check
        %p489 = pneg %p130
      $region42: #{classes_loss.1} parent=27 // pred_check_branch
        %491 = sbr.rel (%p489) target = $region44
      $region43: #{classes_loss.1} parent=27 // pred_region
        _
      $region44: #{classes_loss.1} parent=27 // pred_fallthru
        _
      // Predicated region
      $region45: #{classes_loss.1} parent=27 // pred_check
        %p492 = pneg %p156
      $region46: #{classes_loss.1} parent=27 // pred_check_branch
        %494 = sbr.rel (%p492) target = $region48
      $region47: #{classes_loss.1} parent=27 // pred_region
        _
      $region48: #{classes_loss.1} parent=27 // pred_fallthru
        _
    $region28: #{classes_loss.1} parent=5 // pred_fallthru
      _
    %p495 = scmp.le.s32.totalorder 2, %s13
    // Predicated region
    $region49: #{classes_loss.1} parent=5 // pred_check
      %p496 = pneg %p495
    $region50: #{classes_loss.1} parent=5 // pred_check_branch
      %498 = sbr.rel (%p496) target = $region52
    $region51: #{classes_loss.1} parent=5 // pred_region
      %s499 = ssub.s32 %s13, 2
      // Predicated region
      $region53: #{classes_loss.1} parent=51 // pred_check
        %p500 = pneg %p110
      $region54: #{classes_loss.1} parent=51 // pred_check_branch
        %502 = sbr.rel (%p500) target = $region56
      $region55: #{classes_loss.1} parent=51 // pred_region
        %p503 = scmp.lt.s32.totalorder %s24, 1
        %s504 = scalar_select %p503, %s24, 1
        %s505 = smul.addr %s504, 8
        %s506 = scalar_lea.vmem %s3, %s505
      $region56: #{classes_loss.1} parent=51 // pred_fallthru
        _
      // Predicated region
      $region57: #{classes_loss.1} parent=51 // pred_check
        %p507 = pneg %p136
      $region58: #{classes_loss.1} parent=51 // pred_check_branch
        %509 = sbr.rel (%p507) target = $region60
      $region59: #{classes_loss.1} parent=51 // pred_region
        %p510 = scmp.lt.s32.totalorder %s24, 1
        %s511 = scalar_select %p510, %s24, 1
        %s512 = smul.addr %s511, 8
        %s513 = scalar_lea.vmem %s4, %s512
      $region60: #{classes_loss.1} parent=51 // pred_fallthru
        _
      // Predicated region
      $region61: #{classes_loss.1} parent=51 // pred_check
        %p514 = pneg %p162
      $region62: #{classes_loss.1} parent=51 // pred_check_branch
        %516 = sbr.rel (%p514) target = $region64
      $region63: #{classes_loss.1} parent=51 // pred_region
        %p517 = scmp.lt.s32.totalorder %s24, 1
        %s518 = scalar_select %p517, %s24, 1
        %s519 = smul.addr %s518, 8
        %s520 = scalar_lea.vmem %s5, %s519
      $region64: #{classes_loss.1} parent=51 // pred_fallthru
        _
    $region52: #{classes_loss.1} parent=5 // pred_fallthru
      _
  $region6: #{classes_loss.1} parent=0 // loop_footer
    %s17 = sadd.s32 1, %s13
  $region7: #{classes_loss.1} parent=0 // loop_footer_branch
    %12 = sbr.rel target = $region3
  $region8: #{classes_loss.1} parent=0 // loop_exit
    _

</llo_original>
